<compile_context>
chip_gen: v6e
topology: v6e:2x2x1
jax: 0.10.0
libtpu: 0.0.40
codegen_flags: <defaults>
</compile_context>

<pallas_src>
import functools

import jax
import jax.numpy as jnp
from jax.experimental import pallas as pl
from jax.experimental.pallas import tpu as pltpu


def _square_kernel(x_ref, o_ref):
    # Pure VPU elementwise hot path: square the whole VMEM tile.
    v = x_ref[...]
    o_ref[...] = v * v


_MIN_GRID_STEPS = 8                    # target grid steps for DMA overlap / 2-TC sharding
_MAX_LANE_MULT = 32                    # repack path: lane width capped at 32*128 = 4096
_SMALL_INPUT_BYTES = 4 * 1024 * 1024   # below this, fused XLA x*x is strictly better


@functools.lru_cache(maxsize=None)
def _budgets():
    """(block_byte_budget, vmem_limit_bytes), generation-aware."""
    vmem = 64 * 1024 * 1024            # conservative default: v7x per-TC VMEM
    try:
        info = pltpu.get_tpu_info()
        vmem = int(getattr(info, "vmem_capacity_bytes", vmem))
    except Exception:
        pass
    if vmem >= 96 * 1024 * 1024:       # v5e / v6e: 128 MiB physical VMEM
        return 8 * 1024 * 1024, 64 * 1024 * 1024
    return 4 * 1024 * 1024, 40 * 1024 * 1024   # v7x: 64 MiB per TC — keep headroom


def _row_tile(rows, cols, itemsize, sublane, block_budget):
    """Sublane-aligned row tile: fits the byte budget AND yields >= ~8 grid steps."""
    if rows <= sublane:
        return rows                    # single (full-dim) block; nothing to split
    row_bytes = cols * itemsize
    tr_budget = max(sublane, (block_budget // row_bytes) // sublane * sublane)
    tr_steps = max(sublane, (rows // _MIN_GRID_STEPS) // sublane * sublane)
    return min(tr_budget, tr_steps)


def _square_2d(x2, tr, vmem_limit):
    rows, cols = x2.shape
    n = rows * cols
    nbytes = n * jnp.dtype(x2.dtype).itemsize
    return pl.pallas_call(
        _square_kernel,
        out_shape=jax.ShapeDtypeStruct((rows, cols), x2.dtype),
        grid_spec=pltpu.PrefetchScalarGridSpec(
            num_scalar_prefetch=0,
            grid=(pl.cdiv(rows, tr),),
            in_specs=[pl.BlockSpec((tr, cols), lambda i: (i, 0))],
            out_specs=pl.BlockSpec((tr, cols), lambda i: (i, 0)),
        ),
        compiler_params=pltpu.CompilerParams(
            dimension_semantics=("parallel",),
            vmem_limit_bytes=vmem_limit,
        ),
        cost_estimate=pl.CostEstimate(
            flops=n, transcendentals=0, bytes_accessed=2 * nbytes
        ),
    )(x2)


def square(x, *, force_pallas: bool = False):
    """Elementwise x**2. Pallas kernel when it can run repack-free; XLA otherwise."""
    orig_shape = x.shape
    dtype = x.dtype
    itemsize = jnp.dtype(dtype).itemsize
    n = int(x.size)
    nbytes = n * itemsize

    # Fast paths: empty / small inputs — launch overhead dwarfs the work.
    if n == 0 or (not force_pallas and nbytes < _SMALL_INPUT_BYTES):
        return x * x

    block_budget, vmem_limit = _budgets()
    # dtype-aware sublane granularity: 8 (f32) / 16 (bf16) / 32 (int8, fp8)
    sublane = max(8, 32 // max(itemsize, 1))

    # ---- Path 1: last dim already lane-aligned -> collapse leading dims only.
    # Layout-preserving view, so no relayout copies surround the kernel.
    if x.ndim >= 2 and orig_shape[-1] % 128 == 0:
        cols = orig_shape[-1]
        rows = n // cols
        if sublane * cols * itemsize <= block_budget:
            x2 = x.reshape(rows, cols)
            tr = _row_tile(rows, cols, itemsize, sublane, block_budget)
            out = _square_2d(x2, tr, vmem_limit)
            return out.reshape(orig_shape)
        # Lane dim too wide to tile by rows alone within budget — let XLA handle it.
        return x * x

    # ---- Path 2: N is 128-divisible but the last dim is not. A dense repack
    # would cost an extra HBM relayout pass each way, so only take the Pallas
    # path when explicitly forced (fused XLA x*x is already at the roofline).
    if force_pallas and n % 128 == 0:
        n128 = n // 128
        d = 1
        for cand in range(min(_MAX_LANE_MULT, n128), 0, -1):
            if n128 % cand == 0:
                d = cand
                break
        cols = 128 * d
        rows = n // cols
        if sublane * cols * itemsize <= block_budget:
            x2 = x.reshape(rows, cols)
            tr = _row_tile(rows, cols, itemsize, sublane, block_budget)
            out = _square_2d(x2, tr, vmem_limit)
            return out.reshape(orig_shape)

    # ---- Path 3: ragged element count (N % 128 != 0) or repack not worthwhile.
    # pad + trailing-slice would add two full HBM passes, so route to fused XLA.
    return x * x


if __name__ == "__main__":
    key = jax.random.PRNGKey(0)
    k0, k1, k2 = jax.random.split(key, 3)

    # 1) Small shape consistent with the module (elementwise square); force the
    #    Pallas path so the tiny input exercises the kernel, not the fast path.
    x = jax.random.normal(k0, (2, 4, 16, 16), dtype=jnp.float32)
    y = jax.block_until_ready(square(x, force_pallas=True))
    ref = x ** 2
    assert y.shape == ref.shape and y.dtype == ref.dtype
    assert jnp.allclose(y, ref, atol=1e-6, rtol=1e-6)

    # 2) Lane-aligned last dim -> zero-repack Path 1 with a multi-step grid
    #    (exercises double-buffered DMA overlap / both v7x TensorCores).
    xa = jax.random.normal(k1, (256, 256), dtype=jnp.float32)
    ya = jax.block_until_ready(square(xa, force_pallas=True))
    assert jnp.allclose(ya, xa ** 2, atol=1e-6, rtol=1e-6)

    # 3) Ragged element count (N % 128 != 0): routed to fused XLA x*x so the
    #    pad + trailing-slice HBM passes are never paid.
    xr = jax.random.normal(k2, (3, 7, 257), dtype=jnp.float32)
    yr = jax.block_until_ready(square(xr))
    assert jnp.allclose(yr, xr ** 2, atol=1e-6, rtol=1e-6)

    # 4) Scalar case mirroring torch.tensor(3.0) ** 2 (fast path).
    s = jnp.float32(3.0).reshape(())
    ys = jax.block_until_ready(square(s))
    assert jnp.allclose(ys, jnp.float32(9.0))

    # TODO(synk): backward_pass (torch.autograd) is not implemented; forward only.
    print("KERNEL_OK")
</pallas_src>

<mosaic_0001>
module attributes {stable_mosaic.version = 11 : i64} {
  func.func @_square_kernel(%arg0: i32, %arg1: memref<1x2048xf32, #tpu.memory_space<vmem>>, %arg2: memref<1x2048xf32, #tpu.memory_space<vmem>>) attributes {dimension_semantics = [#tpu.dimension_semantics<parallel>], iteration_bounds = array<i64: 1>, scalar_prefetch = 0 : i64, scratch_operands = 0 : i64, tpu.core_type = #tpu.core_type<tc>, window_params = [{transform_indices = @transform_0, window_bounds = array<i64: 1, 2048>}, {transform_indices = @transform_1, window_bounds = array<i64: 1, 2048>}]} {
    %c0 = arith.constant 0 : index
    %c0_0 = arith.constant 0 : index
    %0 = vector.load %arg1[%c0, %c0_0] : memref<1x2048xf32, #tpu.memory_space<vmem>>, vector<1x2048xf32>
    %1 = arith.mulf %0, %0 : vector<1x2048xf32>
    %c0_1 = arith.constant 0 : index
    %c0_2 = arith.constant 0 : index
    %2 = vector.load %arg2[%c0_1, %c0_2] : memref<1x2048xf32, #tpu.memory_space<vmem>>, vector<1x2048xf32>
    tpu.vector_store %arg2[%c0_1, %c0_2], %1 {strides = array<i32>} : memref<1x2048xf32, #tpu.memory_space<vmem>>, vector<1x2048xf32>,
    return
  }
  func.func @transform_0(%arg0: i32) -> (i32, i32) {
    %c0_i32 = arith.constant 0 : i32
    %c0_i32_0 = arith.constant 0 : i32
    return %arg0, %c0_i32 : i32, i32
  }
  func.func @transform_1(%arg0: i32) -> (i32, i32) {
    %c0_i32 = arith.constant 0 : i32
    %c0_i32_0 = arith.constant 0 : i32
    return %arg0, %c0_i32 : i32, i32
  }
}

</mosaic_0001>

<llo_original>
// kernel: tpu_custom_call.1
$region0: #{tpu_custom_call.1}
  #allocation0 [shape = 'u32[]', space=smem, size = 0x4, offset = 0x4, fixed_abs, tag = 'smem constant byte address 0x4 - core index']
  #allocation1 [shape = 'u32[144,128]{1,0:T(1,128)}', space=vmem, size = 0x12000, scoped, tag = 'internal scratch']
  %s0 = inlined_call_operand.hbm [shape: f32[1,2048], index: 0, kind: input, shape index: {}]
  %s1 = inlined_call_operand.hbm [shape: f32[1,2048], index: 1, kind: output, shape index: {}]
  %s2 = sld [smem:[#allocation0]]
  $region18: #{tpu_custom_call.1} parent=0
    _
  %s4 = ssub.s32 1, %s2
  %s5 = scalar_select 0, %s4, %s2
  $region1: #{tpu_custom_call.1} parent=0
    #allocation2 [shape = 'u8[8192]{0}', space=vmem, size = 0x2000, scoped, tag = 'input window, operand 0, single buffered']
    #allocation3 [shape = 's32[1]{0}', space=sflag, size = 0x4, scoped, tag = 'scoped memory for tpu_custom_call.1']
    #allocation4 [shape = 's32[1]{0}', space=sflag, size = 0x4, scoped, tag = 'scoped memory for tpu_custom_call.1']
    #allocation5 [shape = 'u8[8192]{0}', space=vmem, size = 0x2000, scoped, tag = 'output window, operand 0, single buffered']
    %6 = vsyncpa [#allocation3], 0
    %7 = vsyncpa [#allocation4], 0
    // Predicated region
    $region2: #{tpu_custom_call.1} parent=1 // pred_check
      _
    $region3: #{tpu_custom_call.1} parent=1 // pred_check_branch
      %9 = sbr.rel (0) target = $region5
    $region4: #{tpu_custom_call.1} parent=1 // pred_region
      %s11 = ssub.s32 256, 256
      %12 = vsyncadd [#allocation3], %s11
      %s14 = sshll.u32 [#allocation2], 4
      %s15 = int_to_ptr.vmem [resolvable:$true] %s14
      %17 = dma.hbm_to_vmem [thread:$0]  %s0, 256, %s15, [#allocation3]
    $region5: #{tpu_custom_call.1} parent=1 // pred_fallthru
      _
    // Predicated region
    $region6: #{tpu_custom_call.1} parent=1 // pred_check
      _
    $region7: #{tpu_custom_call.1} parent=1 // pred_check_branch
      %19 = sbr.rel (0) target = $region9
    $region8: #{tpu_custom_call.1} parent=1 // pred_region
      %20 = dma.done [#allocation3], 256
    $region9: #{tpu_custom_call.1} parent=1 // pred_fallthru
      _
    %v21 = vld [vmem:[#allocation2] sm:$0xff]
    %v22 = vld [vmem:[#allocation2 + $0x8] sm:$0xff]
    %v23 = vmul.f32 %v21, %v21
    %v24 = vmul.f32 %v22, %v22
    %25 = vst [vmem:[#allocation5] sm:$0xff] %v23
    %26 = vst [vmem:[#allocation5 + $0x8] sm:$0xff] %v24
    // Predicated region
    $region10: #{tpu_custom_call.1} parent=1 // pred_check
      _
    $region11: #{tpu_custom_call.1} parent=1 // pred_check_branch
      %28 = sbr.rel (0) target = $region13
    $region12: #{tpu_custom_call.1} parent=1 // pred_region
      %s30 = ssub.s32 256, 256
      %31 = vsyncadd [#allocation4], %s30
      %s33 = sshll.u32 [#allocation5], 4
      %s34 = int_to_ptr.vmem [resolvable:$true] %s33
      %36 = dma.vmem_to_hbm [thread:$0]  %s34, 256, %s1, [#allocation4]
    $region13: #{tpu_custom_call.1} parent=1 // pred_fallthru
      _
    // Predicated region
    $region14: #{tpu_custom_call.1} parent=1 // pred_check
      _
    $region15: #{tpu_custom_call.1} parent=1 // pred_check_branch
      %38 = sbr.rel (0) target = $region17
    $region16: #{tpu_custom_call.1} parent=1 // pred_region
      %39 = dma.done [#allocation4], 256
    $region17: #{tpu_custom_call.1} parent=1 // pred_fallthru
      _
    %40 = vsyncpa [#allocation3], 1
    %41 = vsyncpa [#allocation4], 1

</llo_original>
